<compile_context>
chip_gen: v7x
topology: tpu7x:2x2x1
jax: 0.10.0
libtpu: 0.0.40
codegen_flags: <defaults>
</compile_context>

<pallas_src>
import functools

import jax
import jax.numpy as jnp
from jax.experimental import pallas as pl
from jax.experimental.pallas import tpu as pltpu

_LANE = 128
_VMEM_LIMIT = 32 * 1024 * 1024   # explicit; v5e scoped default is only 16 MiB


# ----------------------------------------------------------------------------
# Shared math helpers (traced inside kernels)
# ----------------------------------------------------------------------------
def _focal_pow(base, gamma):
    """(1 - p_t)**gamma, specialized to multiplies for small integer gamma."""
    g = float(gamma)
    if g == 0.0:
        return jnp.ones_like(base)
    if g.is_integer() and 1 <= int(g) <= 8:
        out = base
        for _ in range(int(g) - 1):
            out = out * base
        return out
    return jnp.power(base, jnp.float32(g))


def _binary_elem_loss(x_raw, t_raw, gamma, alpha):
    """Per-element sigmoid focal loss.  Shares a single exp between sigmoid
    and the numerically-stable BCE-with-logits term."""
    x = x_raw.astype(jnp.float32)
    t = t_raw.astype(jnp.float32)
    e = jnp.exp(-jnp.abs(x))                              # one EUP exp
    inv = 1.0 / (1.0 + e)
    probs = jnp.where(x >= 0.0, inv, e * inv)             # sigmoid(x)
    bce = jnp.maximum(x, 0.0) - x * t + jnp.log1p(e)      # stable BCE w/ logits
    p_t = probs * t + (1.0 - probs) * (1.0 - t)
    fw = _focal_pow(1.0 - p_t, gamma)
    if alpha is not None:
        a = jnp.float32(alpha)
        bce = (a * t + (1.0 - a) * (1.0 - t)) * bce
    return fw * bce


def _mc_row_loss(x_raw, labels, alpha_ref, gamma):
    """Per-row multi-class focal loss.  Returns (loss_row (TB,1), onehot)."""
    x = x_raw.astype(jnp.float32)                         # (TB, C)
    tb, c = x.shape
    m = jnp.max(x, axis=1, keepdims=True)
    z = x - m
    ez = jnp.exp(z)
    sumexp = jnp.sum(ez, axis=1, keepdims=True)
    log_sumexp = jnp.log(sumexp)
    class_ids = jax.lax.broadcasted_iota(jnp.int32, (tb, c), 1)
    onehot = (class_ids == labels).astype(jnp.float32)    # labels: (TB,1) i32
    z_t = jnp.sum(z * onehot, axis=1, keepdims=True)      # z at the label
    nll = log_sumexp - z_t                                # -log softmax[label]
    p_t = jnp.exp(-nll)                                   # softmax prob of label
    loss_row = _focal_pow(1.0 - p_t, gamma) * nll
    if alpha_ref is not None:
        alpha_row = alpha_ref[...].astype(jnp.float32)    # (1, C), grid-resident
        alpha_t = jnp.sum(onehot * alpha_row, axis=1, keepdims=True)
        loss_row = alpha_t * loss_row
    return loss_row, onehot


# ----------------------------------------------------------------------------
# Kernels
# ----------------------------------------------------------------------------
def _binary_reduce_kernel(x_ref, t_ref, out_ref, acc_ref, *, gamma, alpha,
                          reduction, inv_n, tile_elems, n_valid,
                          tiles_per_core):
    step = pl.program_id(1)

    @pl.when(step == 0)
    def _init():
        acc_ref[...] = jnp.zeros_like(acc_ref)

    loss = _binary_elem_loss(x_ref[...], t_ref[...], gamma, alpha)
    global_tile = pl.program_id(0) * tiles_per_core + step
    start = global_tile * tile_elems
    # Tiles that are fully valid (the common case) skip all masking math.
    is_partial = start + tile_elems > n_valid

    @pl.when(jnp.logical_not(is_partial))
    def _fast():
        acc_ref[...] += loss                     # pure VPU add, no reduce

    @pl.when(is_partial)
    def _masked():
        tb, lanes = loss.shape
        r = jax.lax.broadcasted_iota(jnp.int32, (tb, lanes), 0)
        c = jax.lax.broadcasted_iota(jnp.int32, (tb, lanes), 1)
        # OOB/padded elements (incl. phantom tiles, where n_valid-start < 0)
        # are zeroed; select discards any NaN/Inf from garbage reads.
        acc_ref[...] += jnp.where(r * lanes + c < n_valid - start, loss, 0.0)

    @pl.when(step == pl.num_programs(1) - 1)
    def _finalize():
        total = jnp.sum(acc_ref[...], keepdims=True)     # one XLU reduce/core
        if reduction == 'mean':
            total = total * jnp.float32(inv_n)
        out_ref[...] = total


def _binary_none_kernel(x_ref, t_ref, out_ref, *, gamma, alpha):
    # OOB rows of a partial last block read garbage but their output writes
    # are clipped by Pallas; padded lanes are sliced off in the wrapper.
    out_ref[...] = _binary_elem_loss(x_ref[...], t_ref[...], gamma, alpha)


def _mc_reduce_kernel(*refs, gamma, reduction, use_alpha, inv_n, tile_rows,
                      n_valid_rows, tiles_per_core):
    if use_alpha:
        x_ref, lbl_ref, alpha_ref, out_ref, acc_ref = refs
    else:
        x_ref, lbl_ref, out_ref, acc_ref = refs
        alpha_ref = None
    step = pl.program_id(1)

    @pl.when(step == 0)
    def _init():
        acc_ref[...] = jnp.zeros_like(acc_ref)

    loss_row, _ = _mc_row_loss(x_ref[...], lbl_ref[...], alpha_ref, gamma)
    global_tile = pl.program_id(0) * tiles_per_core + step
    start_row = global_tile * tile_rows
    is_partial = start_row + tile_rows > n_valid_rows

    @pl.when(jnp.logical_not(is_partial))
    def _fast():
        acc_ref[...] += loss_row

    @pl.when(is_partial)
    def _masked():
        tb = loss_row.shape[0]
        r = jax.lax.broadcasted_iota(jnp.int32, (tb, 1), 0)
        acc_ref[...] += jnp.where(r < n_valid_rows - start_row, loss_row, 0.0)

    @pl.when(step == pl.num_programs(1) - 1)
    def _finalize():
        total = jnp.sum(acc_ref[...], keepdims=True)
        if reduction == 'mean':
            total = total * jnp.float32(inv_n)
        out_ref[...] = total


def _mc_none_kernel(*refs, gamma, use_alpha):
    if use_alpha:
        x_ref, lbl_ref, alpha_ref, out_ref = refs
    else:
        x_ref, lbl_ref, out_ref = refs
        alpha_ref = None
    loss_row, onehot = _mc_row_loss(x_ref[...], lbl_ref[...], alpha_ref, gamma)
    out_ref[...] = onehot * loss_row        # only the label column is nonzero


# ----------------------------------------------------------------------------
# Wrapper
# ----------------------------------------------------------------------------
def _choose_tile_rows(total_rows, cols, max_tile_rows=None,
                      target_bytes=2 << 20):
    """Row tile sized ~target_bytes of REAL (lane-padded) f32 per block.
    cols is rounded up to 128 lanes so small-C blocks don't silently occupy
    up to 25x the naive estimate in VMEM."""
    cols_padded = max(_LANE, ((cols + _LANE - 1) // _LANE) * _LANE)
    rows = max(32, (target_bytes // (cols_padded * 4)) // 32 * 32)
    rows = min(rows, 4096)
    if max_tile_rows is not None:
        rows = min(rows, max(8, (int(max_tile_rows) // 8) * 8))
    if rows >= total_rows:
        return total_rows            # single full-extent block is always legal
    return rows


def _split_tiles(tiles_total):
    """Split the tile range across (up to) 2 TensorCores for the reduce path."""
    num_cores = 2 if tiles_total >= 2 else 1
    tiles_per_core = pl.cdiv(tiles_total, num_cores)
    return num_cores, tiles_per_core


def focal_loss(inputs, targets, *, gamma=2, alpha=None, reduction='mean',
               task_type='binary', num_classes=None, max_tile_rows=None):
    """JAX/Pallas re-implementation of FocalLoss.forward."""
    if reduction not in ('none', 'mean', 'sum'):
        raise ValueError(f"Unsupported reduction '{reduction}'.")

    if task_type in ('binary', 'multi-label'):
        x = jnp.asarray(inputs)          # keep native dtype; cast in-kernel
        t = jnp.asarray(targets)
        orig_shape = x.shape
        n_valid = x.size
        # Lane-dense repack for ANY rank: flatten -> (ceil(N/128), 128).
        xf = x.reshape(-1)
        tf = t.reshape(-1)
        pad = (-xf.shape[0]) % _LANE
        if pad:
            xf = jnp.pad(xf, (0, pad))
            tf = jnp.pad(tf, (0, pad))
        rows = xf.shape[0] // _LANE
        x2 = xf.reshape(rows, _LANE)
        t2 = tf.reshape(rows, _LANE)

        tb = _choose_tile_rows(rows, _LANE, max_tile_rows)
        tiles_total = pl.cdiv(rows, tb)

        if reduction in ('mean', 'sum'):
            num_cores, tpc = _split_tiles(tiles_total)
            # Clamp phantom tiles of the uneven split to the last real block;
            # in-kernel masking zeroes their contribution.
            def blk_map(c, i):
                return (jnp.minimum(c * tpc + i, tiles_total - 1), 0)

            kernel = functools.partial(
                _binary_reduce_kernel, gamma=float(gamma), alpha=alpha,
                reduction=reduction, inv_n=1.0 / float(n_valid),
                tile_elems=tb * _LANE, n_valid=n_valid, tiles_per_core=tpc)
            out = pl.pallas_call(
                kernel,
                out_shape=jax.ShapeDtypeStruct((num_cores, 1), jnp.float32),
                grid_spec=pltpu.PrefetchScalarGridSpec(
                    num_scalar_prefetch=0, grid=(num_cores, tpc),
                    in_specs=[pl.BlockSpec((tb, _LANE), blk_map),
                              pl.BlockSpec((tb, _LANE), blk_map)],
                    out_specs=pl.BlockSpec((1, 1), lambda c, i: (c, 0)),
                    scratch_shapes=[pltpu.VMEM((tb, _LANE), jnp.float32)]),
                compiler_params=pltpu.CompilerParams(
                    dimension_semantics=("parallel", "arbitrary"),
                    vmem_limit_bytes=_VMEM_LIMIT),
            )(x2, t2)
            return jnp.sum(out)          # each per-core partial already scaled

        kernel = functools.partial(_binary_none_kernel,
                                   gamma=float(gamma), alpha=alpha)
        out = pl.pallas_call(
            kernel,
            out_shape=jax.ShapeDtypeStruct((rows, _LANE), jnp.float32),
            grid_spec=pltpu.PrefetchScalarGridSpec(
                num_scalar_prefetch=0, grid=(tiles_total,),
                in_specs=[pl.BlockSpec((tb, _LANE), lambda i: (i, 0)),
                          pl.BlockSpec((tb, _LANE), lambda i: (i, 0))],
                out_specs=pl.BlockSpec((tb, _LANE), lambda i: (i, 0))),
            compiler_params=pltpu.CompilerParams(
                dimension_semantics=("parallel",),
                vmem_limit_bytes=_VMEM_LIMIT),
        )(x2, t2)
        return out.reshape(-1)[:n_valid].reshape(orig_shape)

    elif task_type == 'multi-class':
        x = jnp.asarray(inputs)                      # (B, C), native dtype
        B, C = x.shape
        if num_classes is None:
            num_classes = C
        lbl = jnp.asarray(targets).astype(jnp.int32).reshape(-1, 1)  # (B, 1)
        use_alpha = alpha is not None
        if use_alpha:
            alpha_arr = jnp.asarray(alpha, jnp.float32).reshape(1, num_classes)

        tb = _choose_tile_rows(B, C, max_tile_rows)
        tiles_total = pl.cdiv(B, tb)

        if reduction in ('mean', 'sum'):
            num_cores, tpc = _split_tiles(tiles_total)

            def row_map(c, i):
                return (jnp.minimum(c * tpc + i, tiles_total - 1), 0)

            args = [x, lbl]
            in_specs = [pl.BlockSpec((tb, C), row_map),
                        pl.BlockSpec((tb, 1), row_map)]
            if use_alpha:
                args.append(alpha_arr)
                # grid-invariant: stays resident in VMEM, not re-DMA'd per tile
                in_specs.append(
                    pl.BlockSpec((1, num_classes), lambda c, i: (0, 0)))

            # NOTE: 'mean' divides by B*C — this matches the PyTorch module,
            # which takes .mean() over the dense one-hot-masked (B, C) tensor.
            kernel = functools.partial(
                _mc_reduce_kernel, gamma=float(gamma), reduction=reduction,
                use_alpha=use_alpha, inv_n=1.0 / float(B * C),
                tile_rows=tb, n_valid_rows=B, tiles_per_core=tpc)
            out = pl.pallas_call(
                kernel,
                out_shape=jax.ShapeDtypeStruct((num_cores, 1), jnp.float32),
                grid_spec=pltpu.PrefetchScalarGridSpec(
                    num_scalar_prefetch=0, grid=(num_cores, tpc),
                    in_specs=in_specs,
                    out_specs=pl.BlockSpec((1, 1), lambda c, i: (c, 0)),
                    scratch_shapes=[pltpu.VMEM((tb, 1), jnp.float32)]),
                compiler_params=pltpu.CompilerParams(
                    dimension_semantics=("parallel", "arbitrary"),
                    vmem_limit_bytes=_VMEM_LIMIT),
            )(*args)
            return jnp.sum(out)

        args = [x, lbl]
        in_specs = [pl.BlockSpec((tb, C), lambda i: (i, 0)),
                    pl.BlockSpec((tb, 1), lambda i: (i, 0))]
        if use_alpha:
            args.append(alpha_arr)
            in_specs.append(pl.BlockSpec((1, num_classes), lambda i: (0, 0)))

        kernel = functools.partial(_mc_none_kernel, gamma=float(gamma),
                                   use_alpha=use_alpha)
        out = pl.pallas_call(
            kernel,
            out_shape=jax.ShapeDtypeStruct((B, C), jnp.float32),
            grid_spec=pltpu.PrefetchScalarGridSpec(
                num_scalar_prefetch=0, grid=(tiles_total,),
                in_specs=in_specs,
                out_specs=pl.BlockSpec((tb, C), lambda i: (i, 0))),
            compiler_params=pltpu.CompilerParams(
                dimension_semantics=("parallel",),
                vmem_limit_bytes=_VMEM_LIMIT),
        )(*args)
        return out

    else:
        raise ValueError(f"Unsupported task_type '{task_type}'.")


# ----------------------------------------------------------------------------
# Pure-JAX references (for correctness check)
# ----------------------------------------------------------------------------
def _ref_binary(x, t, gamma, alpha, reduction):
    x = x.astype(jnp.float32); t = t.astype(jnp.float32)
    probs = jax.nn.sigmoid(x)
    bce = jnp.maximum(x, 0.0) - x * t + jnp.log1p(jnp.exp(-jnp.abs(x)))
    p_t = probs * t + (1 - probs) * (1 - t)
    fw = (1 - p_t) ** gamma
    if alpha is not None:
        bce = (alpha * t + (1 - alpha) * (1 - t)) * bce
    loss = fw * bce
    return loss.mean() if reduction == 'mean' else (
        loss.sum() if reduction == 'sum' else loss)


def _ref_multiclass(x, labels, gamma, alpha, reduction, num_classes):
    x = x.astype(jnp.float32)
    logp = jax.nn.log_softmax(x, axis=1)
    probs = jnp.exp(logp)
    onehot = jax.nn.one_hot(labels, num_classes, dtype=jnp.float32)
    ce = -onehot * logp
    p_t = jnp.sum(probs * onehot, axis=1)
    fw = (1 - p_t) ** gamma
    if alpha is not None:
        alpha = jnp.asarray(alpha, jnp.float32)
        ce = alpha[labels][:, None] * ce
    loss = fw[:, None] * ce
    return loss.mean() if reduction == 'mean' else (
        loss.sum() if reduction == 'sum' else loss)


# ----------------------------------------------------------------------------
if __name__ == "__main__":
    key = jax.random.PRNGKey(0)
    ks = jax.random.split(key, 10)

    # ---- binary (1-D), default config: gamma=2, alpha=None, mean -----------
    B = 16
    logits_bin = jax.random.normal(ks[0], (B,), jnp.float32)
    targets_bin = (jax.random.uniform(ks[1], (B,)) > 0.5).astype(jnp.float32)
    out_bin = focal_loss(logits_bin, targets_bin, gamma=2, alpha=None,
                         reduction='mean', task_type='binary')
    jax.block_until_ready(out_bin)
    ref_bin = _ref_binary(logits_bin, targets_bin, 2.0, None, 'mean')
    assert jnp.allclose(out_bin, ref_bin, atol=1e-5, rtol=1e-5)

    # ---- binary (1-D), reduction='none' (lane-dense repack + slice back) ---
    out_bin_none = focal_loss(logits_bin, targets_bin, gamma=2, alpha=0.25,
                              reduction='none', task_type='binary')
    jax.block_until_ready(out_bin_none)
    ref_bin_none = _ref_binary(logits_bin, targets_bin, 2.0, 0.25, 'none')
    assert out_bin_none.shape == (B,)
    assert jnp.allclose(out_bin_none, ref_bin_none, atol=1e-5, rtol=1e-5)

    # ---- binary (1-D) larger: multi-tile + 2-core split + masked tail ------
    B_big = 5000                          # 40 packed rows, 120 padded lanes
    logits_big = jax.random.normal(ks[2], (B_big,), jnp.float32)
    targets_big = (jax.random.uniform(ks[3], (B_big,)) > 0.5).astype(jnp.float32)
    out_big = focal_loss(logits_big, targets_big, gamma=2, alpha=0.25,
                         reduction='mean', task_type='binary',
                         max_tile_rows=8)   # 5 tiles -> (2, 3) grid + phantom
    jax.block_until_ready(out_big)
    ref_big = _ref_binary(logits_big, targets_big, 2.0, 0.25, 'mean')
    assert jnp.allclose(out_big, ref_big, atol=1e-5, rtol=1e-5)

    # ---- multi-class with per-class alpha, mean -----------------------------
    B2, C = 8, 5
    logits_mc = jax.random.normal(ks[4], (B2, C), jnp.float32)
    labels_mc = jax.random.randint(ks[5], (B2,), 0, C)
    alpha_vec = [0.1, 0.2, 0.3, 0.25, 0.15]
    out_mc = focal_loss(logits_mc, labels_mc, gamma=2, alpha=alpha_vec,
                        reduction='mean', task_type='multi-class',
                        num_classes=C)
    jax.block_until_ready(out_mc)
    ref_mc = _ref_multiclass(logits_mc, labels_mc, 2.0, alpha_vec, 'mean', C)
    assert jnp.allclose(out_mc, ref_mc, atol=1e-5, rtol=1e-5)

    # ---- multi-class 'none' (dense (B,C) output) ----------------------------
    out_mc_none = focal_loss(logits_mc, labels_mc, gamma=2, alpha=None,
                             reduction='none', task_type='multi-class',
                             num_classes=C)
    jax.block_until_ready(out_mc_none)
    ref_mc_none = _ref_multiclass(logits_mc, labels_mc, 2.0, None, 'none', C)
    assert jnp.allclose(out_mc_none, ref_mc_none, atol=1e-5, rtol=1e-5)

    # ---- multi-class multi-tile: 2-core split + partial last tile ----------
    B4 = 100
    logits_mc2 = jax.random.normal(ks[6], (B4, C), jnp.float32)
    labels_mc2 = jax.random.randint(ks[7], (B4,), 0, C)
    out_mc2 = focal_loss(logits_mc2, labels_mc2, gamma=2, alpha=alpha_vec,
                         reduction='sum', task_type='multi-class',
                         num_classes=C, max_tile_rows=16)
    jax.block_until_ready(out_mc2)
    ref_mc2 = _ref_multiclass(logits_mc2, labels_mc2, 2.0, alpha_vec, 'sum', C)
    assert jnp.allclose(out_mc2, ref_mc2, atol=1e-4, rtol=1e-5)

    # ---- multi-label (2-D, small C): lane-dense flattening, sum ------------
    B3 = 40
    logits_ml = jax.random.normal(ks[8], (B3, C), jnp.float32)
    targets_ml = (jax.random.uniform(ks[9], (B3, C)) > 0.5).astype(jnp.float32)
    out_ml = focal_loss(logits_ml, targets_ml, gamma=2, alpha=0.25,
                        reduction='sum', task_type='multi-label',
                        max_tile_rows=16)
    jax.block_until_ready(out_ml)
    ref_ml = _ref_binary(logits_ml, targets_ml, 2.0, 0.25, 'sum')
    assert jnp.allclose(out_ml, ref_ml, atol=1e-4, rtol=1e-5)

    # ---- multi-label 'none' (2-D output reshaped back) ----------------------
    out_ml_none = focal_loss(logits_ml, targets_ml, gamma=2, alpha=None,
                             reduction='none', task_type='multi-label')
    jax.block_until_ready(out_ml_none)
    ref_ml_none = _ref_binary(logits_ml, targets_ml, 2.0, None, 'none')
    assert out_ml_none.shape == (B3, C)
    assert jnp.allclose(out_ml_none, ref_ml_none, atol=1e-5, rtol=1e-5)

    print("KERNEL_OK")
</pallas_src>

<mosaic_0001>
module attributes {stable_mosaic.version = 11 : i64} {
  func.func @_binary_reduce_kernel(%arg0: i32, %arg1: i32, %arg2: memref<1x128xf32, #tpu.memory_space<vmem>>, %arg3: memref<1x128xf32, #tpu.memory_space<vmem>>, %arg4: memref<1x1xf32, #tpu.memory_space<vmem>>, %arg5: memref<1x128xf32, #tpu.memory_space<vmem>>) attributes {dimension_semantics = [#tpu.dimension_semantics<parallel>, #tpu.dimension_semantics<arbitrary>], iteration_bounds = array<i64: 1, 1>, scalar_prefetch = 0 : i64, scratch_operands = 1 : i64, tpu.core_type = #tpu.core_type<tc>, window_params = [{transform_indices = @transform_0, window_bounds = array<i64: 1, 128>}, {transform_indices = @transform_1, window_bounds = array<i64: 1, 128>}, {transform_indices = @transform_2, window_bounds = array<i64: 1, 1>}]} {
    %c0_i32 = arith.constant 0 : i32
    %0 = arith.cmpi eq, %arg1, %c0_i32 : i32
    %1 = arith.extui %0 : i1 to i32
    %c0_i32_0 = arith.constant 0 : i32
    %2 = arith.cmpi ne, %1, %c0_i32_0 : i32
    scf.if %2 {
      %cst_16 = arith.constant 0.000000e+00 : f32
      %47 = vector.broadcast %cst_16 : f32 to vector<1x128xf32>
      %c0_17 = arith.constant 0 : index
      %c0_18 = arith.constant 0 : index
      %48 = vector.load %arg5[%c0_17, %c0_18] : memref<1x128xf32, #tpu.memory_space<vmem>>, vector<1x128xf32>
      tpu.vector_store %arg5[%c0_17, %c0_18], %47 {strides = array<i32>} : memref<1x128xf32, #tpu.memory_space<vmem>>, vector<1x128xf32>,
    } else {
    }
    %c0 = arith.constant 0 : index
    %c0_1 = arith.constant 0 : index
    %3 = vector.load %arg2[%c0, %c0_1] : memref<1x128xf32, #tpu.memory_space<vmem>>, vector<1x128xf32>
    %c0_2 = arith.constant 0 : index
    %c0_3 = arith.constant 0 : index
    %4 = vector.load %arg3[%c0_2, %c0_3] : memref<1x128xf32, #tpu.memory_space<vmem>>, vector<1x128xf32>
    %5 = math.absf %3 : vector<1x128xf32>
    %cst = arith.constant 0.000000e+00 : f32
    %6 = vector.broadcast %cst : f32 to vector<1x128xf32>
    %7 = arith.subf %6, %5 : vector<1x128xf32>
    %8 = math.exp %7 : vector<1x128xf32>
    %cst_4 = arith.constant 1.000000e+00 : f32
    %9 = vector.broadcast %cst_4 : f32 to vector<1x128xf32>
    %10 = arith.addf %9, %8 : vector<1x128xf32>
    %cst_5 = arith.constant 1.000000e+00 : f32
    %11 = vector.broadcast %cst_5 : f32 to vector<1x128xf32>
    %12 = arith.divf %11, %10 : vector<1x128xf32>
    %cst_6 = arith.constant 0.000000e+00 : f32
    %13 = vector.broadcast %cst_6 : f32 to vector<1x128xf32>
    %14 = arith.cmpf oge, %3, %13 : vector<1x128xf32>
    %15 = arith.mulf %8, %12 : vector<1x128xf32>
    %16 = arith.select %14, %12, %15 : vector<1x128xi1>, vector<1x128xf32>
    %cst_7 = arith.constant 0.000000e+00 : f32
    %17 = vector.broadcast %cst_7 : f32 to vector<1x128xf32>
    %18 = arith.maximumf %3, %17 : vector<1x128xf32>
    %19 = arith.mulf %3, %4 : vector<1x128xf32>
    %20 = arith.subf %18, %19 : vector<1x128xf32>
    %21 = math.log1p %8 : vector<1x128xf32>
    %22 = arith.addf %20, %21 : vector<1x128xf32>
    %23 = arith.mulf %16, %4 : vector<1x128xf32>
    %cst_8 = arith.constant 1.000000e+00 : f32
    %24 = vector.broadcast %cst_8 : f32 to vector<1x128xf32>
    %25 = arith.subf %24, %16 : vector<1x128xf32>
    %cst_9 = arith.constant 1.000000e+00 : f32
    %26 = vector.broadcast %cst_9 : f32 to vector<1x128xf32>
    %27 = arith.subf %26, %4 : vector<1x128xf32>
    %28 = arith.mulf %25, %27 : vector<1x128xf32>
    %29 = arith.addf %23, %28 : vector<1x128xf32>
    %cst_10 = arith.constant 1.000000e+00 : f32
    %30 = vector.broadcast %cst_10 : f32 to vector<1x128xf32>
    %31 = arith.subf %30, %29 : vector<1x128xf32>
    %32 = arith.mulf %31, %31 : vector<1x128xf32>
    %33 = arith.mulf %32, %22 : vector<1x128xf32>
    %c1_i32 = arith.constant 1 : i32
    %34 = arith.muli %arg0, %c1_i32 : i32
    %35 = arith.addi %34, %arg1 : i32
    %c128_i32 = arith.constant 128 : i32
    %36 = arith.muli %35, %c128_i32 : i32
    %c128_i32_11 = arith.constant 128 : i32
    %37 = arith.addi %36, %c128_i32_11 : i32
    %c16_i32 = arith.constant 16 : i32
    %38 = arith.cmpi sgt, %37, %c16_i32 : i32
    %true = arith.constant true
    %39 = arith.xori %38, %true : i1
    %40 = arith.extui %39 : i1 to i32
    %c0_i32_12 = arith.constant 0 : i32
    %41 = arith.cmpi ne, %40, %c0_i32_12 : i32
    scf.if %41 {
      %c0_16 = arith.constant 0 : index
      %c0_17 = arith.constant 0 : index
      %47 = vector.load %arg5[%c0_16, %c0_17] : memref<1x128xf32, #tpu.memory_space<vmem>>, vector<1x128xf32>
      %48 = arith.addf %47, %33 : vector<1x128xf32>
      %c0_18 = arith.constant 0 : index
      %c0_19 = arith.constant 0 : index
      %49 = vector.load %arg5[%c0_18, %c0_19] : memref<1x128xf32, #tpu.memory_space<vmem>>, vector<1x128xf32>
      tpu.vector_store %arg5[%c0_18, %c0_19], %48 {strides = array<i32>} : memref<1x128xf32, #tpu.memory_space<vmem>>, vector<1x128xf32>,
    } else {
    }
    %42 = arith.extui %38 : i1 to i32
    %c0_i32_13 = arith.constant 0 : i32
    %43 = arith.cmpi ne, %42, %c0_i32_13 : i32
    scf.if %43 {
      %47 = tpu.iota {dimensions = array<i32: 0>} : vector<1x128xi32>
      %48 = tpu.iota {dimensions = array<i32: 1>} : vector<1x128xi32>
      %c0_16 = arith.constant 0 : index
      %c0_17 = arith.constant 0 : index
      %49 = vector.load %arg5[%c0_16, %c0_17] : memref<1x128xf32, #tpu.memory_space<vmem>>, vector<1x128xf32>
      %c128_i32_18 = arith.constant 128 : i32
      %50 = vector.broadcast %c128_i32_18 : i32 to vector<1x128xi32>
      %51 = arith.muli %47, %50 : vector<1x128xi32>
      %52 = arith.addi %51, %48 : vector<1x128xi32>
      %c16_i32_19 = arith.constant 16 : i32
      %53 = arith.subi %c16_i32_19, %36 : i32
      %54 = vector.broadcast %53 : i32 to vector<1x128xi32>
      %55 = arith.cmpi slt, %52, %54 : vector<1x128xi32>
      %cst_20 = arith.constant 0.000000e+00 : f32
      %56 = vector.broadcast %cst_20 : f32 to vector<1x128xf32>
      %57 = arith.select %55, %33, %56 : vector<1x128xi1>, vector<1x128xf32>
      %58 = arith.addf %49, %57 : vector<1x128xf32>
      %c0_21 = arith.constant 0 : index
      %c0_22 = arith.constant 0 : index
      %59 = vector.load %arg5[%c0_21, %c0_22] : memref<1x128xf32, #tpu.memory_space<vmem>>, vector<1x128xf32>
      tpu.vector_store %arg5[%c0_21, %c0_22], %58 {strides = array<i32>} : memref<1x128xf32, #tpu.memory_space<vmem>>, vector<1x128xf32>,
    } else {
    }
    %c0_i32_14 = arith.constant 0 : i32
    %44 = arith.cmpi eq, %arg1, %c0_i32_14 : i32
    %45 = arith.extui %44 : i1 to i32
    %c0_i32_15 = arith.constant 0 : i32
    %46 = arith.cmpi ne, %45, %c0_i32_15 : i32
    scf.if %46 {
      %c0_16 = arith.constant 0 : index
      %c0_17 = arith.constant 0 : index
      %47 = vector.load %arg5[%c0_16, %c0_17] : memref<1x128xf32, #tpu.memory_space<vmem>>, vector<1x128xf32>
      %48 = vector.shape_cast %47 : vector<1x128xf32> to vector<1x1x128xf32>
      %cst_18 = arith.constant dense<0.000000e+00> : vector<1xf32>
      %49 = vector.multi_reduction <add>, %48, %cst_18 [1, 2] : vector<1x1x128xf32> to vector<1xf32>
      %50 = vector.shape_cast %49 : vector<1xf32> to vector<1x1x1xf32>
      %51 = vector.extract %50[0, 0, 0] : f32 from vector<1x1x1xf32>
      %52 = vector.broadcast %51 : f32 to vector<1x1xf32>
      %cst_19 = arith.constant 6.250000e-02 : f32
      %53 = vector.broadcast %cst_19 : f32 to vector<1x1xf32>
      %54 = arith.mulf %52, %53 : vector<1x1xf32>
      %c0_20 = arith.constant 0 : index
      %c0_21 = arith.constant 0 : index
      %55 = vector.load %arg4[%c0_20, %c0_21] : memref<1x1xf32, #tpu.memory_space<vmem>>, vector<1x1xf32>
      tpu.vector_store %arg4[%c0_20, %c0_21], %54 {strides = array<i32>} : memref<1x1xf32, #tpu.memory_space<vmem>>, vector<1x1xf32>,
    } else {
    }
    return
  }
  func.func @transform_0(%arg0: i32, %arg1: i32) -> (i32, i32) {
    %c1_i32 = arith.constant 1 : i32
    %0 = arith.muli %arg0, %c1_i32 : i32
    %1 = arith.addi %0, %arg1 : i32
    %c0_i32 = arith.constant 0 : i32
    %2 = arith.minsi %1, %c0_i32 : i32
    %c0_i32_0 = arith.constant 0 : i32
    %c0_i32_1 = arith.constant 0 : i32
    return %2, %c0_i32_0 : i32, i32
  }
  func.func @transform_1(%arg0: i32, %arg1: i32) -> (i32, i32) {
    %c1_i32 = arith.constant 1 : i32
    %0 = arith.muli %arg0, %c1_i32 : i32
    %1 = arith.addi %0, %arg1 : i32
    %c0_i32 = arith.constant 0 : i32
    %2 = arith.minsi %1, %c0_i32 : i32
    %c0_i32_0 = arith.constant 0 : i32
    %c0_i32_1 = arith.constant 0 : i32
    return %2, %c0_i32_0 : i32, i32
  }
  func.func @transform_2(%arg0: i32, %arg1: i32) -> (i32, i32) {
    %c0_i32 = arith.constant 0 : i32
    %c0_i32_0 = arith.constant 0 : i32
    return %arg0, %c0_i32 : i32, i32
  }
}

</mosaic_0001>

<llo_original>
// kernel: tpu_custom_call.1
$region0: #{tpu_custom_call.1}
  #allocation0 [shape = 'u32[]', space=smem, size = 0x4, offset = 0x4, fixed_abs, tag = 'smem constant byte address 0x4 - core index']
  #allocation1 [shape = 'u32[144,128]{1,0:T(1,128)}', space=vmem, size = 0x12000, scoped, tag = 'internal scratch']
  #allocation2 [shape = 'f32[1,128]{1,0:T(1,128)}', space=vmem, size = 0x200, scoped, tag = 'scratch operand']
  %s0 = inlined_call_operand.hbm [shape: f32[1,128], index: 0, kind: input, shape index: {}]
  %s1 = inlined_call_operand.vmem [shape: f32[1,128], index: 1, kind: input, shape index: {}]
  %s2 = inlined_call_operand.hbm [shape: f32[1,1], index: 2, kind: output, shape index: {}]
  %s3 = sld [smem:[#allocation0]]
  $region38: #{tpu_custom_call.1} parent=0
    _
  %s5 = ssub.s32 1, %s3
  %s6 = scalar_select 0, %s5, %s3
  $region1: #{tpu_custom_call.1} parent=0
    #allocation3 [shape = 'u8[512]{0}', space=vmem, size = 0x400, scoped, tag = 'input window, operand 0, single buffered']
    #allocation4 [shape = 's32[1]{0}', space=sflag, size = 0x4, scoped, tag = 'scoped memory for tpu_custom_call.1']
    #allocation5 [shape = 's32[1]{0}', space=sflag, size = 0x4, scoped, tag = 'scoped memory for tpu_custom_call.1']
    #allocation6 [shape = 'u8[512]{0}', space=vmem, size = 0x400, scoped, tag = 'output window, operand 0, single buffered']
    %7 = vsyncpa [#allocation4], 0
    %8 = vsyncpa [#allocation5], 0
    // Predicated region
    $region2: #{tpu_custom_call.1} parent=1 // pred_check
      _
    $region3: #{tpu_custom_call.1} parent=1 // pred_check_branch
      %10 = sbr.rel (0) target = $region5
    $region4: #{tpu_custom_call.1} parent=1 // pred_region
      %s11 = sadd.s32 0, 0
      %p12 = scmp.lt.s32.totalorder %s11, 0
      %s13 = scalar_select %p12, %s11, 0
      %s15 = ssub.s32 16, 16
      %16 = vsyncadd [#allocation4], %s15
      %s17 = smul.addr %s13, 16
      %s18 = scalar_lea.hbm %s0, %s17
      %s20 = sshll.u32 [#allocation3], 4
      %s21 = int_to_ptr.vmem [resolvable:$true] %s20
      %23 = dma.hbm_to_vmem [thread:$0]  %s18, 16, %s21, [#allocation4]
    $region5: #{tpu_custom_call.1} parent=1 // pred_fallthru
      _
    // Predicated region
    $region6: #{tpu_custom_call.1} parent=1 // pred_check
      _
    $region7: #{tpu_custom_call.1} parent=1 // pred_check_branch
      %25 = sbr.rel (0) target = $region9
    $region8: #{tpu_custom_call.1} parent=1 // pred_region
      %s26 = sadd.s32 0, 0
      %p27 = scmp.lt.s32.totalorder %s26, 0
      %s28 = scalar_select %p27, %s26, 0
      %p29 = scmp.lt.s32.totalorder %s28, 0
      %s30 = scalar_select %p29, %s28, 0
      %s31 = scalar_lea.vmem %s1, %s30
      %s32 = sadd.s32 0, 0
      %p33 = scmp.lt.s32.totalorder %s32, 0
      %s34 = scalar_select %p33, %s32, 0
    $region9: #{tpu_custom_call.1} parent=1 // pred_fallthru
      _
    // Predicated region
    $region10: #{tpu_custom_call.1} parent=1 // pred_check
      _
    $region11: #{tpu_custom_call.1} parent=1 // pred_check_branch
      %36 = sbr.rel (0) target = $region13
    $region12: #{tpu_custom_call.1} parent=1 // pred_region
      %37 = dma.done [#allocation4], 16
    $region13: #{tpu_custom_call.1} parent=1 // pred_fallthru
      _
    %s38 = sadd.s32 0, 0
    %p39 = scmp.lt.s32.totalorder %s38, 0
    %s40 = scalar_select %p39, %s38, 0
    %p41 = scmp.lt.s32.totalorder %s40, 0
    %s42 = scalar_select %p41, %s40, 0
    %s43 = scalar_lea.vmem %s1, %s42
    %s44 = sadd.s32 0, 0
    %p45 = scmp.lt.s32.totalorder %s44, 0
    %s46 = scalar_select %p45, %s44, 0
    %s47 = sadd.s32 0, 0
    %p48 = scmp.lt.s32.totalorder %s47, 0
    %s49 = scalar_select %p48, %s47, 0
    %p50 = scmp.lt.s32.totalorder %s49, 0
    %s51 = scalar_select %p50, %s49, 0
    %s52 = scalar_lea.vmem %s1, %s51
    %s53 = sadd.s32 0, 0
    %p54 = scmp.lt.s32.totalorder %s53, 0
    %s55 = scalar_select %p54, %s53, 0
    %p56 = scmp.eq.s32.totalorder 0, 0
    // Predicated region
    $region14: #{tpu_custom_call.1} parent=1 // pred_check
      %p57 = pneg %p56
    $region15: #{tpu_custom_call.1} parent=1 // pred_check_branch
      %59 = sbr.rel (%p57) target = $region17
    $region16: #{tpu_custom_call.1} parent=1 // pred_region
      %60 = vst [vmem:[#allocation2] sm:$0x1] 0.0
    $region17: #{tpu_custom_call.1} parent=1 // pred_fallthru
      _
    %v61 = vld [vmem:[#allocation3] sm:$0x1]
    %v62 = vld [vmem:[%s52] sm:$0x1]
    %v63 = vand.u32 2147483647, %v61
    %v64 = vsub.f32 0.0, %v63
    %v65 = vmul.f32 %v64, 1.442695
    %v66 = vpow.pop %v65
    %v67 = vadd.f32 %v66, 1.0
    %v68 = vrcp.pop %v67
    %v69 = vmul.f32 1.0, %v68
    %vm70 = vcmp.ge.f32.partialorder %v61, 0.0
    %v71 = vmul.f32 %v66, %v69
    %v72 = vsel %vm70, %v69, %v71
    %v73 = vmax.f32 %v61, 0.0
    %v74 = vmul.f32 %v61, %v62
    %v75 = vsub.f32 %v73, %v74
    %v76 = vadd.f32 %v66, 1.0
    %v77 = vlog2.pop %v76
    %v78 = vmul.f32 %v77, 0.6931472
    %v79 = vmul.f32 -0.5, %v66
    %v80 = vadd.f32 %v79, 1.0
    %v81 = vmul.f32 %v80, %v66
    %v82 = vand.u32 2147483647, %v66
    %vm83 = vcmp.lt.f32.partialorder %v82, 0.0004427343
    %v84 = vsel %vm83, %v81, %v78
    %v85 = vadd.f32 %v75, %v84
    %v86 = vmul.f32 %v72, %v62
    %v87 = vsub.f32 1.0, %v72
    %v88 = vsub.f32 1.0, %v62
    %v89 = vmul.f32 %v87, %v88
    %v90 = vadd.f32 %v86, %v89
    %v91 = vsub.f32 1.0, %v90
    %v92 = vmul.f32 %v91, %v91
    %v93 = vmul.f32 %v92, %v85
    %s94 = sadd.s32 0, 0
    %s95 = smul.u32 %s94, 128
    %s96 = sadd.s32 %s95, 128
    %p97 = scmp.gt.s32.totalorder %s96, 16
    %p98 = scmp.le.s32.totalorder %s96, 16
    // Predicated region
    $region18: #{tpu_custom_call.1} parent=1 // pred_check
      %p99 = pneg %p98
    $region19: #{tpu_custom_call.1} parent=1 // pred_check_branch
      %101 = sbr.rel (%p99) target = $region21
    $region20: #{tpu_custom_call.1} parent=1 // pred_region
      %v102 = vld [vmem:[#allocation2] sm:$0x1]
      %v103 = vadd.f32 %v102, %v93
      %104 = vst [vmem:[#allocation2] sm:$0x1] %v103
    $region21: #{tpu_custom_call.1} parent=1 // pred_fallthru
      _
    // Predicated region
    $region22: #{tpu_custom_call.1} parent=1 // pred_check
      %p105 = pneg %p97
    $region23: #{tpu_custom_call.1} parent=1 // pred_check_branch
      %107 = sbr.rel (%p105) target = $region25
    $region24: #{tpu_custom_call.1} parent=1 // pred_region
      %v108 = vlaneseq
      %v109 = vshrl.u32 %v108, 7
      %v110 = vlaneseq
      %v111 = vand.u32 %v110, 127
      %v112 = vld [vmem:[#allocation2] sm:$0x1]
      %v113 = vmul.u32 %v109, 128
      %v114 = vadd.s32 %v113, %v111
      %s115 = ssub.s32 16, %s95
      %v116 = vstv %s115
      %vm117 = vcmp.lt.s32.totalorder %v114, %v116
      %v118 = vsel %vm117, %v93, 0.0
      %v119 = vadd.f32 %v112, %v118
      %120 = vst [vmem:[#allocation2] sm:$0x1] %v119
    $region25: #{tpu_custom_call.1} parent=1 // pred_fallthru
      _
    // Predicated region
    $region26: #{tpu_custom_call.1} parent=1 // pred_check
      %p121 = pneg %p56
    $region27: #{tpu_custom_call.1} parent=1 // pred_check_branch
      %123 = sbr.rel (%p121) target = $region29
    $region28: #{tpu_custom_call.1} parent=1 // pred_region
      %v124 = vld [vmem:[#allocation2] sm:$0x1]
      %vm125 = vcmask 1040384
      %v126 = vsel %vm125, %v124, 0.0
      %127 = vadd.xlane.f32.xlu0 %v126
      %v128 = vpop.xlane.xlu0 %127
      %v129 = vrot.slane %v128, 4
      %v130 = vadd.f32 %v128, %v129
      %v131 = vrot.slane %v130, 2
      %v132 = vadd.f32 %v130, %v131
      %v133 = vrot.slane %v132, 1
      %v134 = vadd.f32 %v132, %v133
      %s135 = vtos %v134
      %v136 = vstv %s135
      %v137 = vmul.f32 %v136, 0.0625
      %vm138 = vcmask 0
      %139 = vst.msk [vmem:[#allocation6] sm:$0x1] %vm138, %v137
    $region29: #{tpu_custom_call.1} parent=1 // pred_fallthru
      _
    // Predicated region
    $region30: #{tpu_custom_call.1} parent=1 // pred_check
      _
    $region31: #{tpu_custom_call.1} parent=1 // pred_check_branch
      %141 = sbr.rel (0) target = $region33
    $region32: #{tpu_custom_call.1} parent=1 // pred_region
      %s143 = ssub.s32 16, 16
      %144 = vsyncadd [#allocation5], %s143
      %s146 = sshll.u32 [#allocation6], 4
      %s147 = int_to_ptr.vmem [resolvable:$true] %s146
      %149 = dma.vmem_to_hbm [thread:$0]  %s147, 16, %s2, [#allocation5]
    $region33: #{tpu_custom_call.1} parent=1 // pred_fallthru
      _
    // Predicated region
    $region34: #{tpu_custom_call.1} parent=1 // pred_check
      _
    $region35: #{tpu_custom_call.1} parent=1 // pred_check_branch
      %151 = sbr.rel (0) target = $region37
    $region36: #{tpu_custom_call.1} parent=1 // pred_region
      %152 = dma.done [#allocation5], 16
    $region37: #{tpu_custom_call.1} parent=1 // pred_fallthru
      _
    %153 = vsyncpa [#allocation4], 1
    %154 = vsyncpa [#allocation5], 1

</llo_original>
